<compile_context>
chip_gen: v7x
topology: tpu7x:2x2x1
jax: 0.10.0
libtpu: 0.0.40
codegen_flags: <defaults>
</compile_context>

<pallas_src>
import jax
import jax.numpy as jnp
from jax.experimental import pallas as pl
from jax.experimental.pallas import tpu as pltpu


_LANE = 128
_MIN_GRID_BLOCKS = 8                      # >=8 steps: both v7x TCs busy, <=1/8 imbalance
_DEFAULT_SCOPED_VMEM = 16 * 1024 * 1024   # smallest scoped-VMEM default (v5e)
_MAX_VMEM_LIMIT = 48 * 1024 * 1024        # safe ceiling on v7x (64 MiB physical per TC)


def _swish_kernel(x_ref, o_ref):
    # swish(x) = x * sigmoid(x); compute in f32, cast back to the HBM dtype.
    # NOTE: ragged boundary blocks feed uninitialized lanes through exp();
    # that is safe here because TPUs don't trap on inf/NaN and Pallas masks
    # the out-of-bounds stores. (Elementwise only — do not reuse this pattern
    # for reduction-style kernels.)
    xf = x_ref[...].astype(jnp.float32)
    o_ref[...] = (xf * jax.nn.sigmoid(xf)).astype(o_ref.dtype)


def _compiler_params(block_bytes: int) -> pltpu.CompilerParams:
    # in + out, each double-buffered, plus headroom for compiler scratch.
    need = 4 * block_bytes + 4 * 1024 * 1024
    vmem_limit = min(need, _MAX_VMEM_LIMIT) if need > _DEFAULT_SCOPED_VMEM else None
    return pltpu.CompilerParams(
        dimension_semantics=("parallel",),
        vmem_limit_bytes=vmem_limit,
    )


def _swish_2d(flat, n, dtype, itemsize, target_block_bytes):
    """Main path: n is a multiple of 128 -> lane-dense 2-D slab."""
    cols = next(c for c in (4096, 2048, 1024, 512, 256, 128) if n % c == 0)
    rows = n // cols
    x2 = flat.reshape(rows, cols)  # metadata-only for contiguous data

    sub = max(1, 4 // itemsize) * 8                 # 8 f32 / 16 bf16 / 32 int8-width
    # Rows per block from the ~8 MiB byte budget.
    tr = max(sub, (target_block_bytes // (cols * itemsize)) // sub * sub)
    # Keep >= _MIN_GRID_BLOCKS grid steps when the row count allows it, so both
    # v7x TensorCores stream and the pipeline has something to overlap.
    if rows >= _MIN_GRID_BLOCKS * sub:
        tr = min(tr, max(sub, (rows // _MIN_GRID_BLOCKS) // sub * sub))
    # Tiny row counts only: single full-extent block (always layout-legal).
    if tr >= rows:
        tr = rows

    out2 = pl.pallas_call(
        _swish_kernel,
        out_shape=jax.ShapeDtypeStruct((rows, cols), dtype),
        grid_spec=pltpu.PrefetchScalarGridSpec(
            num_scalar_prefetch=0,
            grid=(pl.cdiv(rows, tr),),               # ragged last block is masked
            in_specs=[pl.BlockSpec((tr, cols), lambda i: (i, 0))],
            out_specs=pl.BlockSpec((tr, cols), lambda i: (i, 0)),
        ),
        compiler_params=_compiler_params(tr * cols * itemsize),
    )(x2)
    return out2.reshape(-1)


def _swish_1d(flat, n, dtype, itemsize, target_block_bytes):
    """Fallback: n not a multiple of 128. 1-D grid over the flat array with a
    ragged (masked) last block — no padding pass, no extra HBM traffic."""
    granule = max(1, 4 // itemsize) * 8 * _LANE      # 1024 f32 / 2048 bf16 elements
    blk = max(granule, (target_block_bytes // itemsize) // granule * granule)
    if n >= _MIN_GRID_BLOCKS * granule:
        blk = min(blk, max(granule, (n // _MIN_GRID_BLOCKS) // granule * granule))
    if blk >= n:
        blk = n                                      # full extent: always legal

    out = pl.pallas_call(
        _swish_kernel,
        out_shape=jax.ShapeDtypeStruct((n,), dtype),
        grid_spec=pltpu.PrefetchScalarGridSpec(
            num_scalar_prefetch=0,
            grid=(pl.cdiv(n, blk),),
            in_specs=[pl.BlockSpec((blk,), lambda i: (i,))],
            out_specs=pl.BlockSpec((blk,), lambda i: (i,)),
        ),
        compiler_params=_compiler_params(blk * itemsize),
    )(flat)
    return out


def _swish_xla(x):
    xf = x.astype(jnp.float32)
    return (xf * jax.nn.sigmoid(xf)).astype(x.dtype)


def swish(
    x: jax.Array,
    *,
    target_block_bytes: int = 8 * 1024 * 1024,
    min_pallas_bytes: int = 256 * 1024,
) -> jax.Array:
    """Elementwise Swish over an arbitrarily-shaped floating-point array."""
    dtype = x.dtype
    if not jnp.issubdtype(dtype, jnp.floating):
        raise TypeError(f"swish expects a floating dtype, got {dtype}")

    n = x.size
    if n == 0:
        return x
    itemsize = jnp.dtype(dtype).itemsize

    # Small-input fast path: a 1-block pallas_call is dominated by dispatch and
    # pipeline fill and cannot fuse with neighbouring ops; plain XLA wins.
    if n * itemsize < min_pallas_bytes:
        return _swish_xla(x)

    flat = x.reshape(-1)
    if n % _LANE == 0:
        out_flat = _swish_2d(flat, n, dtype, itemsize, target_block_bytes)
    else:
        out_flat = _swish_1d(flat, n, dtype, itemsize, target_block_bytes)
    return out_flat.reshape(x.shape)


def _ref_swish(x):
    xf = x.astype(jnp.float32)
    return (xf * jax.nn.sigmoid(xf)).astype(x.dtype)


if __name__ == "__main__":
    key = jax.random.PRNGKey(0)
    k0, k1, k2, k3, k4 = jax.random.split(key, 5)

    # Conformer-FFN-sized activation: large enough for the real Pallas path.
    x = jax.random.normal(k0, (2, 128, 512), dtype=jnp.float32)
    y = jax.block_until_ready(swish(x))
    assert y.shape == x.shape and y.dtype == x.dtype
    assert jnp.allclose(y, _ref_swish(x), atol=1e-6, rtol=1e-6)

    # Ragged last row-block (row count not divisible by the row tile, 9 blocks).
    xa = jax.random.normal(k1, (5, 104, 384), dtype=jnp.float32)
    ya = jax.block_until_ready(swish(xa))
    assert jnp.allclose(ya, _ref_swish(xa), atol=1e-6, rtol=1e-6)

    # Element count not a multiple of 128 -> 1-D ragged-grid path (no pad pass).
    xb = jax.random.normal(k2, (257, 1001), dtype=jnp.float32)
    yb = jax.block_until_ready(swish(xb))
    assert jnp.allclose(yb, _ref_swish(xb), atol=1e-6, rtol=1e-6)

    # Tiny input: XLA fast path, plus a forced-Pallas check of the same data.
    xc = jax.random.normal(k3, (2, 8, 32), dtype=jnp.float32)
    yc = jax.block_until_ready(swish(xc))
    yc_forced = jax.block_until_ready(swish(xc, min_pallas_bytes=0))
    assert jnp.allclose(yc, _ref_swish(xc), atol=1e-6, rtol=1e-6)
    assert jnp.allclose(yc_forced, _ref_swish(xc), atol=1e-6, rtol=1e-6)

    # bf16 stays bf16 in HBM; f32 compute only inside the kernel.
    xd = jax.random.normal(k4, (2, 256, 512), dtype=jnp.bfloat16)
    yd = jax.block_until_ready(swish(xd))
    assert yd.dtype == jnp.bfloat16
    assert jnp.allclose(
        yd.astype(jnp.float32), _ref_swish(xd).astype(jnp.float32),
        atol=1e-2, rtol=1e-2,
    )

    print("KERNEL_OK")
</pallas_src>

<mosaic_0001>
module attributes {stable_mosaic.version = 11 : i64} {
  func.func @_swish_kernel(%arg0: i32, %arg1: memref<32x4096xf32, #tpu.memory_space<vmem>>, %arg2: memref<32x4096xf32, #tpu.memory_space<vmem>>) attributes {dimension_semantics = [#tpu.dimension_semantics<parallel>], iteration_bounds = array<i64: 1>, scalar_prefetch = 0 : i64, scratch_operands = 0 : i64, tpu.core_type = #tpu.core_type<tc>, window_params = [{transform_indices = @transform_0, window_bounds = array<i64: 32, 4096>}, {transform_indices = @transform_1, window_bounds = array<i64: 32, 4096>}]} {
    %c0 = arith.constant 0 : index
    %c0_0 = arith.constant 0 : index
    %0 = vector.load %arg1[%c0, %c0_0] : memref<32x4096xf32, #tpu.memory_space<vmem>>, vector<32x4096xf32>
    %1 = arith.negf %0 : vector<32x4096xf32>
    %2 = math.exp %1 : vector<32x4096xf32>
    %cst = arith.constant 1.000000e+00 : f32
    %3 = vector.broadcast %cst : f32 to vector<32x4096xf32>
    %4 = arith.addf %3, %2 : vector<32x4096xf32>
    %5 = arith.divf %3, %4 : vector<32x4096xf32>
    %6 = arith.mulf %0, %5 : vector<32x4096xf32>
    %c0_1 = arith.constant 0 : index
    %c0_2 = arith.constant 0 : index
    %7 = vector.load %arg2[%c0_1, %c0_2] : memref<32x4096xf32, #tpu.memory_space<vmem>>, vector<32x4096xf32>
    tpu.vector_store %arg2[%c0_1, %c0_2], %6 {strides = array<i32>} : memref<32x4096xf32, #tpu.memory_space<vmem>>, vector<32x4096xf32>,
    return
  }
  func.func @transform_0(%arg0: i32) -> (i32, i32) {
    %c0_i32 = arith.constant 0 : i32
    %c0_i32_0 = arith.constant 0 : i32
    return %arg0, %c0_i32 : i32, i32
  }
  func.func @transform_1(%arg0: i32) -> (i32, i32) {
    %c0_i32 = arith.constant 0 : i32
    %c0_i32_0 = arith.constant 0 : i32
    return %arg0, %c0_i32 : i32, i32
  }
}

</mosaic_0001>

<llo_original>
// kernel: tpu_custom_call.1
$region0: #{tpu_custom_call.1}
  #allocation0 [shape = 'u32[]', space=smem, size = 0x4, offset = 0x4, fixed_abs, tag = 'smem constant byte address 0x4 - core index']
  #allocation1 [shape = 'u32[144,128]{1,0:T(1,128)}', space=vmem, size = 0x12000, scoped, tag = 'internal scratch']
  %s0 = inlined_call_operand.hbm [shape: f32[32,4096], index: 0, kind: input, shape index: {}]
  %s1 = inlined_call_operand.hbm [shape: f32[32,4096], index: 1, kind: output, shape index: {}]
  %s2 = sld [smem:[#allocation0]]
  $region18: #{tpu_custom_call.1} parent=0
    _
  %s4 = ssub.s32 1, %s2
  %s5 = scalar_select 0, %s4, %s2
  $region1: #{tpu_custom_call.1} parent=0
    #allocation2 [shape = 'u8[524288]{0}', space=vmem, size = 0x80000, scoped, tag = 'input window, operand 0, single buffered']
    #allocation3 [shape = 's32[1]{0}', space=sflag, size = 0x4, scoped, tag = 'scoped memory for tpu_custom_call.1']
    #allocation4 [shape = 's32[1]{0}', space=sflag, size = 0x4, scoped, tag = 'scoped memory for tpu_custom_call.1']
    #allocation5 [shape = 'u8[524288]{0}', space=vmem, size = 0x80000, scoped, tag = 'output window, operand 0, single buffered']
    %6 = vsyncpa [#allocation3], 0
    %7 = vsyncpa [#allocation4], 0
    // Predicated region
    $region2: #{tpu_custom_call.1} parent=1 // pred_check
      _
    $region3: #{tpu_custom_call.1} parent=1 // pred_check_branch
      %9 = sbr.rel (0) target = $region5
    $region4: #{tpu_custom_call.1} parent=1 // pred_region
      %s11 = ssub.s32 16384, 16384
      %12 = vsyncadd [#allocation3], %s11
      %s13 = sshll.u32 [#allocation2], 4
      %s14 = int_to_ptr.vmem [resolvable:$true] %s13
      %19 = dma.hbm_to_vmem [thread:$0]  %s0, 16384, %s14, [#allocation3], 4096, 4096, 256
    $region5: #{tpu_custom_call.1} parent=1 // pred_fallthru
      _
    // Predicated region
    $region6: #{tpu_custom_call.1} parent=1 // pred_check
      _
    $region7: #{tpu_custom_call.1} parent=1 // pred_check_branch
      %21 = sbr.rel (0) target = $region9
    $region8: #{tpu_custom_call.1} parent=1 // pred_region
      %22 = dma.done [#allocation3], 16384
    $region9: #{tpu_custom_call.1} parent=1 // pred_fallthru
      _
    %v23 = vld [vmem:[#allocation2] sm:$0xff]
    %v24 = vld [vmem:[#allocation2 + $0x8] sm:$0xff]
    %v25 = vld [vmem:[#allocation2 + $0x10] sm:$0xff]
    %v26 = vld [vmem:[#allocation2 + $0x18] sm:$0xff]
    %v27 = vld [vmem:[#allocation2 + $0x20] sm:$0xff]
    %v28 = vld [vmem:[#allocation2 + $0x28] sm:$0xff]
    %v29 = vld [vmem:[#allocation2 + $0x30] sm:$0xff]
    %v30 = vld [vmem:[#allocation2 + $0x38] sm:$0xff]
    %v31 = vld [vmem:[#allocation2 + $0x40] sm:$0xff]
    %v32 = vld [vmem:[#allocation2 + $0x48] sm:$0xff]
    %v33 = vld [vmem:[#allocation2 + $0x50] sm:$0xff]
    %v34 = vld [vmem:[#allocation2 + $0x58] sm:$0xff]
    %v35 = vld [vmem:[#allocation2 + $0x60] sm:$0xff]
    %v36 = vld [vmem:[#allocation2 + $0x68] sm:$0xff]
    %v37 = vld [vmem:[#allocation2 + $0x70] sm:$0xff]
    %v38 = vld [vmem:[#allocation2 + $0x78] sm:$0xff]
    %v39 = vld [vmem:[#allocation2 + $0x80] sm:$0xff]
    %v40 = vld [vmem:[#allocation2 + $0x88] sm:$0xff]
    %v41 = vld [vmem:[#allocation2 + $0x90] sm:$0xff]
    %v42 = vld [vmem:[#allocation2 + $0x98] sm:$0xff]
    %v43 = vld [vmem:[#allocation2 + $0xa0] sm:$0xff]
    %v44 = vld [vmem:[#allocation2 + $0xa8] sm:$0xff]
    %v45 = vld [vmem:[#allocation2 + $0xb0] sm:$0xff]
    %v46 = vld [vmem:[#allocation2 + $0xb8] sm:$0xff]
    %v47 = vld [vmem:[#allocation2 + $0xc0] sm:$0xff]
    %v48 = vld [vmem:[#allocation2 + $0xc8] sm:$0xff]
    %v49 = vld [vmem:[#allocation2 + $0xd0] sm:$0xff]
    %v50 = vld [vmem:[#allocation2 + $0xd8] sm:$0xff]
    %v51 = vld [vmem:[#allocation2 + $0xe0] sm:$0xff]
    %v52 = vld [vmem:[#allocation2 + $0xe8] sm:$0xff]
    %v53 = vld [vmem:[#allocation2 + $0xf0] sm:$0xff]
    %v54 = vld [vmem:[#allocation2 + $0xf8] sm:$0xff]
    %v55 = vld [vmem:[#allocation2 + $0x100] sm:$0xff]
    %v56 = vld [vmem:[#allocation2 + $0x108] sm:$0xff]
    %v57 = vld [vmem:[#allocation2 + $0x110] sm:$0xff]
    %v58 = vld [vmem:[#allocation2 + $0x118] sm:$0xff]
    %v59 = vld [vmem:[#allocation2 + $0x120] sm:$0xff]
    %v60 = vld [vmem:[#allocation2 + $0x128] sm:$0xff]
    %v61 = vld [vmem:[#allocation2 + $0x130] sm:$0xff]
    %v62 = vld [vmem:[#allocation2 + $0x138] sm:$0xff]
    %v63 = vld [vmem:[#allocation2 + $0x140] sm:$0xff]
    %v64 = vld [vmem:[#allocation2 + $0x148] sm:$0xff]
    %v65 = vld [vmem:[#allocation2 + $0x150] sm:$0xff]
    %v66 = vld [vmem:[#allocation2 + $0x158] sm:$0xff]
    %v67 = vld [vmem:[#allocation2 + $0x160] sm:$0xff]
    %v68 = vld [vmem:[#allocation2 + $0x168] sm:$0xff]
    %v69 = vld [vmem:[#allocation2 + $0x170] sm:$0xff]
    %v70 = vld [vmem:[#allocation2 + $0x178] sm:$0xff]
    %v71 = vld [vmem:[#allocation2 + $0x180] sm:$0xff]
    %v72 = vld [vmem:[#allocation2 + $0x188] sm:$0xff]
    %v73 = vld [vmem:[#allocation2 + $0x190] sm:$0xff]
    %v74 = vld [vmem:[#allocation2 + $0x198] sm:$0xff]
    %v75 = vld [vmem:[#allocation2 + $0x1a0] sm:$0xff]
    %v76 = vld [vmem:[#allocation2 + $0x1a8] sm:$0xff]
    %v77 = vld [vmem:[#allocation2 + $0x1b0] sm:$0xff]
    %v78 = vld [vmem:[#allocation2 + $0x1b8] sm:$0xff]
    %v79 = vld [vmem:[#allocation2 + $0x1c0] sm:$0xff]
    %v80 = vld [vmem:[#allocation2 + $0x1c8] sm:$0xff]
    %v81 = vld [vmem:[#allocation2 + $0x1d0] sm:$0xff]
    %v82 = vld [vmem:[#allocation2 + $0x1d8] sm:$0xff]
    %v83 = vld [vmem:[#allocation2 + $0x1e0] sm:$0xff]
    %v84 = vld [vmem:[#allocation2 + $0x1e8] sm:$0xff]
    %v85 = vld [vmem:[#allocation2 + $0x1f0] sm:$0xff]
    %v86 = vld [vmem:[#allocation2 + $0x1f8] sm:$0xff]
    %v87 = vld [vmem:[#allocation2 + $0x200] sm:$0xff]
    %v88 = vld [vmem:[#allocation2 + $0x208] sm:$0xff]
    %v89 = vld [vmem:[#allocation2 + $0x210] sm:$0xff]
    %v90 = vld [vmem:[#allocation2 + $0x218] sm:$0xff]
    %v91 = vld [vmem:[#allocation2 + $0x220] sm:$0xff]
    %v92 = vld [vmem:[#allocation2 + $0x228] sm:$0xff]
    %v93 = vld [vmem:[#allocation2 + $0x230] sm:$0xff]
    %v94 = vld [vmem:[#allocation2 + $0x238] sm:$0xff]
    %v95 = vld [vmem:[#allocation2 + $0x240] sm:$0xff]
    %v96 = vld [vmem:[#allocation2 + $0x248] sm:$0xff]
    %v97 = vld [vmem:[#allocation2 + $0x250] sm:$0xff]
    %v98 = vld [vmem:[#allocation2 + $0x258] sm:$0xff]
    %v99 = vld [vmem:[#allocation2 + $0x260] sm:$0xff]
    %v100 = vld [vmem:[#allocation2 + $0x268] sm:$0xff]
    %v101 = vld [vmem:[#allocation2 + $0x270] sm:$0xff]
    %v102 = vld [vmem:[#allocation2 + $0x278] sm:$0xff]
    %v103 = vld [vmem:[#allocation2 + $0x280] sm:$0xff]
    %v104 = vld [vmem:[#allocation2 + $0x288] sm:$0xff]
    %v105 = vld [vmem:[#allocation2 + $0x290] sm:$0xff]
    %v106 = vld [vmem:[#allocation2 + $0x298] sm:$0xff]
    %v107 = vld [vmem:[#allocation2 + $0x2a0] sm:$0xff]
    %v108 = vld [vmem:[#allocation2 + $0x2a8] sm:$0xff]
    %v109 = vld [vmem:[#allocation2 + $0x2b0] sm:$0xff]
    %v110 = vld [vmem:[#allocation2 + $0x2b8] sm:$0xff]
    %v111 = vld [vmem:[#allocation2 + $0x2c0] sm:$0xff]
    %v112 = vld [vmem:[#allocation2 + $0x2c8] sm:$0xff]
    %v113 = vld [vmem:[#allocation2 + $0x2d0] sm:$0xff]
    %v114 = vld [vmem:[#allocation2 + $0x2d8] sm:$0xff]
    %v115 = vld [vmem:[#allocation2 + $0x2e0] sm:$0xff]
    %v116 = vld [vmem:[#allocation2 + $0x2e8] sm:$0xff]
    %v117 = vld [vmem:[#allocation2 + $0x2f0] sm:$0xff]
    %v118 = vld [vmem:[#allocation2 + $0x2f8] sm:$0xff]
    %v119 = vld [vmem:[#allocation2 + $0x300] sm:$0xff]
    %v120 = vld [vmem:[#allocation2 + $0x308] sm:$0xff]
    %v121 = vld [vmem:[#allocation2 + $0x310] sm:$0xff]
    %v122 = vld [vmem:[#allocation2 + $0x318] sm:$0xff]
    %v123 = vld [vmem:[#allocation2 + $0x320] sm:$0xff]
    %v124 = vld [vmem:[#allocation2 + $0x328] sm:$0xff]
    %v125 = vld [vmem:[#allocation2 + $0x330] sm:$0xff]
    %v126 = vld [vmem:[#allocation2 + $0x338] sm:$0xff]
    %v127 = vld [vmem:[#allocation2 + $0x340] sm:$0xff]
    %v128 = vld [vmem:[#allocation2 + $0x348] sm:$0xff]
    %v129 = vld [vmem:[#allocation2 + $0x350] sm:$0xff]
    %v130 = vld [vmem:[#allocation2 + $0x358] sm:$0xff]
    %v131 = vld [vmem:[#allocation2 + $0x360] sm:$0xff]
    %v132 = vld [vmem:[#allocation2 + $0x368] sm:$0xff]
    %v133 = vld [vmem:[#allocation2 + $0x370] sm:$0xff]
    %v134 = vld [vmem:[#allocation2 + $0x378] sm:$0xff]
    %v135 = vld [vmem:[#allocation2 + $0x380] sm:$0xff]
    %v136 = vld [vmem:[#allocation2 + $0x388] sm:$0xff]
    %v137 = vld [vmem:[#allocation2 + $0x390] sm:$0xff]
    %v138 = vld [vmem:[#allocation2 + $0x398] sm:$0xff]
    %v139 = vld [vmem:[#allocation2 + $0x3a0] sm:$0xff]
    %v140 = vld [vmem:[#allocation2 + $0x3a8] sm:$0xff]
    %v141 = vld [vmem:[#allocation2 + $0x3b0] sm:$0xff]
    %v142 = vld [vmem:[#allocation2 + $0x3b8] sm:$0xff]
    %v143 = vld [vmem:[#allocation2 + $0x3c0] sm:$0xff]
    %v144 = vld [vmem:[#allocation2 + $0x3c8] sm:$0xff]
    %v145 = vld [vmem:[#allocation2 + $0x3d0] sm:$0xff]
    %v146 = vld [vmem:[#allocation2 + $0x3d8] sm:$0xff]
    %v147 = vld [vmem:[#allocation2 + $0x3e0] sm:$0xff]
    %v148 = vld [vmem:[#allocation2 + $0x3e8] sm:$0xff]
    %v149 = vld [vmem:[#allocation2 + $0x3f0] sm:$0xff]
    %v150 = vld [vmem:[#allocation2 + $0x3f8] sm:$0xff]
    %v151 = vxor.u32 %v23, 2147483648
    %v152 = vxor.u32 %v24, 2147483648
    %v153 = vxor.u32 %v25, 2147483648
    %v154 = vxor.u32 %v26, 2147483648
    %v155 = vxor.u32 %v27, 2147483648
    %v156 = vxor.u32 %v28, 2147483648
    %v157 = vxor.u32 %v29, 2147483648
    %v158 = vxor.u32 %v30, 2147483648
    %v159 = vxor.u32 %v31, 2147483648
    %v160 = vxor.u32 %v32, 2147483648
    %v161 = vxor.u32 %v33, 2147483648
    %v162 = vxor.u32 %v34, 2147483648
    %v163 = vxor.u32 %v35, 2147483648
    %v164 = vxor.u32 %v36, 2147483648
    %v165 = vxor.u32 %v37, 2147483648
    %v166 = vxor.u32 %v38, 2147483648
    %v167 = vxor.u32 %v39, 2147483648
    %v168 = vxor.u32 %v40, 2147483648
    %v169 = vxor.u32 %v41, 2147483648
    %v170 = vxor.u32 %v42, 2147483648
    %v171 = vxor.u32 %v43, 2147483648
    %v172 = vxor.u32 %v44, 2147483648
    %v173 = vxor.u32 %v45, 2147483648
    %v174 = vxor.u32 %v46, 2147483648
    %v175 = vxor.u32 %v47, 2147483648
    %v176 = vxor.u32 %v48, 2147483648
    %v177 = vxor.u32 %v49, 2147483648
    %v178 = vxor.u32 %v50, 2147483648
    %v179 = vxor.u32 %v51, 2147483648
    %v180 = vxor.u32 %v52, 2147483648
    %v181 = vxor.u32 %v53, 2147483648
    %v182 = vxor.u32 %v54, 2147483648
    %v183 = vxor.u32 %v55, 2147483648
    %v184 = vxor.u32 %v56, 2147483648
    %v185 = vxor.u32 %v57, 2147483648
    %v186 = vxor.u32 %v58, 2147483648
    %v187 = vxor.u32 %v59, 2147483648
    %v188 = vxor.u32 %v60, 2147483648
    %v189 = vxor.u32 %v61, 2147483648
    %v190 = vxor.u32 %v62, 2147483648
    %v191 = vxor.u32 %v63, 2147483648
    %v192 = vxor.u32 %v64, 2147483648
    %v193 = vxor.u32 %v65, 2147483648
    %v194 = vxor.u32 %v66, 2147483648
    %v195 = vxor.u32 %v67, 2147483648
    %v196 = vxor.u32 %v68, 2147483648
    %v197 = vxor.u32 %v69, 2147483648
    %v198 = vxor.u32 %v70, 2147483648
    %v199 = vxor.u32 %v71, 2147483648
    %v200 = vxor.u32 %v72, 2147483648
    %v201 = vxor.u32 %v73, 2147483648
    %v202 = vxor.u32 %v74, 2147483648
    %v203 = vxor.u32 %v75, 2147483648
    %v204 = vxor.u32 %v76, 2147483648
    %v205 = vxor.u32 %v77, 2147483648
    %v206 = vxor.u32 %v78, 2147483648
    %v207 = vxor.u32 %v79, 2147483648
    %v208 = vxor.u32 %v80, 2147483648
    %v209 = vxor.u32 %v81, 2147483648
    %v210 = vxor.u32 %v82, 2147483648
    %v211 = vxor.u32 %v83, 2147483648
    %v212 = vxor.u32 %v84, 2147483648
    %v213 = vxor.u32 %v85, 2147483648
    %v214 = vxor.u32 %v86, 2147483648
    %v215 = vxor.u32 %v87, 2147483648
    %v216 = vxor.u32 %v88, 2147483648
    %v217 = vxor.u32 %v89, 2147483648
    %v218 = vxor.u32 %v90, 2147483648
    %v219 = vxor.u32 %v91, 2147483648
    %v220 = vxor.u32 %v92, 2147483648
    %v221 = vxor.u32 %v93, 2147483648
    %v222 = vxor.u32 %v94, 2147483648
    %v223 = vxor.u32 %v95, 2147483648
    %v224 = vxor.u32 %v96, 2147483648
    %v225 = vxor.u32 %v97, 2147483648
    %v226 = vxor.u32 %v98, 2147483648
    %v227 = vxor.u32 %v99, 2147483648
    %v228 = vxor.u32 %v100, 2147483648
    %v229 = vxor.u32 %v101, 2147483648
    %v230 = vxor.u32 %v102, 2147483648
    %v231 = vxor.u32 %v103, 2147483648
    %v232 = vxor.u32 %v104, 2147483648
    %v233 = vxor.u32 %v105, 2147483648
    %v234 = vxor.u32 %v106, 2147483648
    %v235 = vxor.u32 %v107, 2147483648
    %v236 = vxor.u32 %v108, 2147483648
    %v237 = vxor.u32 %v109, 2147483648
    %v238 = vxor.u32 %v110, 2147483648
    %v239 = vxor.u32 %v111, 2147483648
    %v240 = vxor.u32 %v112, 2147483648
    %v241 = vxor.u32 %v113, 2147483648
    %v242 = vxor.u32 %v114, 2147483648
    %v243 = vxor.u32 %v115, 2147483648
    %v244 = vxor.u32 %v116, 2147483648
    %v245 = vxor.u32 %v117, 2147483648
    %v246 = vxor.u32 %v118, 2147483648
    %v247 = vxor.u32 %v119, 2147483648
    %v248 = vxor.u32 %v120, 2147483648
    %v249 = vxor.u32 %v121, 2147483648
    %v250 = vxor.u32 %v122, 2147483648
    %v251 = vxor.u32 %v123, 2147483648
    %v252 = vxor.u32 %v124, 2147483648
    %v253 = vxor.u32 %v125, 2147483648
    %v254 = vxor.u32 %v126, 2147483648
    %v255 = vxor.u32 %v127, 2147483648
    %v256 = vxor.u32 %v128, 2147483648
    %v257 = vxor.u32 %v129, 2147483648
    %v258 = vxor.u32 %v130, 2147483648
    %v259 = vxor.u32 %v131, 2147483648
    %v260 = vxor.u32 %v132, 2147483648
    %v261 = vxor.u32 %v133, 2147483648
    %v262 = vxor.u32 %v134, 2147483648
    %v263 = vxor.u32 %v135, 2147483648
    %v264 = vxor.u32 %v136, 2147483648
    %v265 = vxor.u32 %v137, 2147483648
    %v266 = vxor.u32 %v138, 2147483648
    %v267 = vxor.u32 %v139, 2147483648
    %v268 = vxor.u32 %v140, 2147483648
    %v269 = vxor.u32 %v141, 2147483648
    %v270 = vxor.u32 %v142, 2147483648
    %v271 = vxor.u32 %v143, 2147483648
    %v272 = vxor.u32 %v144, 2147483648
    %v273 = vxor.u32 %v145, 2147483648
    %v274 = vxor.u32 %v146, 2147483648
    %v275 = vxor.u32 %v147, 2147483648
    %v276 = vxor.u32 %v148, 2147483648
    %v277 = vxor.u32 %v149, 2147483648
    %v278 = vxor.u32 %v150, 2147483648
    %v279 = vmul.f32 %v151, 1.442695
    %v280 = vpow.pop %v279
    %v281 = vmul.f32 %v152, 1.442695
    %v282 = vpow.pop %v281
    %v283 = vmul.f32 %v153, 1.442695
    %v284 = vpow.pop %v283
    %v285 = vmul.f32 %v154, 1.442695
    %v286 = vpow.pop %v285
    %v287 = vmul.f32 %v155, 1.442695
    %v288 = vpow.pop %v287
    %v289 = vmul.f32 %v156, 1.442695
    %v290 = vpow.pop %v289
    %v291 = vmul.f32 %v157, 1.442695
    %v292 = vpow.pop %v291
    %v293 = vmul.f32 %v158, 1.442695
    %v294 = vpow.pop %v293
    %v295 = vmul.f32 %v159, 1.442695
    %v296 = vpow.pop %v295
    %v297 = vmul.f32 %v160, 1.442695
    %v298 = vpow.pop %v297
    %v299 = vmul.f32 %v161, 1.442695
    %v300 = vpow.pop %v299
    %v301 = vmul.f32 %v162, 1.442695
    %v302 = vpow.pop %v301
    %v303 = vmul.f32 %v163, 1.442695
    %v304 = vpow.pop %v303
    %v305 = vmul.f32 %v164, 1.442695
    %v306 = vpow.pop %v305
    %v307 = vmul.f32 %v165, 1.442695
    %v308 = vpow.pop %v307
    %v309 = vmul.f32 %v166, 1.442695
    %v310 = vpow.pop %v309
    %v311 = vmul.f32 %v167, 1.442695
    %v312 = vpow.pop %v311
    %v313 = vmul.f32 %v168, 1.442695
    %v314 = vpow.pop %v313
    %v315 = vmul.f32 %v169, 1.442695
    %v316 = vpow.pop %v315
    %v317 = vmul.f32 %v170, 1.442695
    %v318 = vpow.pop %v317
    %v319 = vmul.f32 %v171, 1.442695
    %v320 = vpow.pop %v319
    %v321 = vmul.f32 %v172, 1.442695
    %v322 = vpow.pop %v321
    %v323 = vmul.f32 %v173, 1.442695
    %v324 = vpow.pop %v323
    %v325 = vmul.f32 %v174, 1.442695
    %v326 = vpow.pop %v325
    %v327 = vmul.f32 %v175, 1.442695
    %v328 = vpow.pop %v327
    %v329 = vmul.f32 %v176, 1.442695
    %v330 = vpow.pop %v329
    %v331 = vmul.f32 %v177, 1.442695
    %v332 = vpow.pop %v331
    %v333 = vmul.f32 %v178, 1.442695
    %v334 = vpow.pop %v333
    %v335 = vmul.f32 %v179, 1.442695
    %v336 = vpow.pop %v335
    %v337 = vmul.f32 %v180, 1.442695
    %v338 = vpow.pop %v337
    %v339 = vmul.f32 %v181, 1.442695
    %v340 = vpow.pop %v339
    %v341 = vmul.f32 %v182, 1.442695
    %v342 = vpow.pop %v341
    %v343 = vmul.f32 %v183, 1.442695
    %v344 = vpow.pop %v343
    %v345 = vmul.f32 %v184, 1.442695
    %v346 = vpow.pop %v345
    %v347 = vmul.f32 %v185, 1.442695
    %v348 = vpow.pop %v347
    %v349 = vmul.f32 %v186, 1.442695
    %v350 = vpow.pop %v349
    %v351 = vmul.f32 %v187, 1.442695
    %v352 = vpow.pop %v351
    %v353 = vmul.f32 %v188, 1.442695
    %v354 = vpow.pop %v353
    %v355 = vmul.f32 %v189, 1.442695
    %v356 = vpow.pop %v355
    %v357 = vmul.f32 %v190, 1.442695
    %v358 = vpow.pop %v357
    %v359 = vmul.f32 %v191, 1.442695
    %v360 = vpow.pop %v359
    %v361 = vmul.f32 %v192, 1.442695
    %v362 = vpow.pop %v361
    %v363 = vmul.f32 %v193, 1.442695
    %v364 = vpow.pop %v363
    %v365 = vmul.f32 %v194, 1.442695
    %v366 = vpow.pop %v365
    %v367 = vmul.f32 %v195, 1.442695
    %v368 = vpow.pop %v367
    %v369 = vmul.f32 %v196, 1.442695
    %v370 = vpow.pop %v369
    %v371 = vmul.f32 %v197, 1.442695
    %v372 = vpow.pop %v371
    %v373 = vmul.f32 %v198, 1.442695
    %v374 = vpow.pop %v373
    %v375 = vmul.f32 %v199, 1.442695
    %v376 = vpow.pop %v375
    %v377 = vmul.f32 %v200, 1.442695
    %v378 = vpow.pop %v377
    %v379 = vmul.f32 %v201, 1.442695
    %v380 = vpow.pop %v379
    %v381 = vmul.f32 %v202, 1.442695
    %v382 = vpow.pop %v381
    %v383 = vmul.f32 %v203, 1.442695
    %v384 = vpow.pop %v383
    %v385 = vmul.f32 %v204, 1.442695
    %v386 = vpow.pop %v385
    %v387 = vmul.f32 %v205, 1.442695
    %v388 = vpow.pop %v387
    %v389 = vmul.f32 %v206, 1.442695
    %v390 = vpow.pop %v389
    %v391 = vmul.f32 %v207, 1.442695
    %v392 = vpow.pop %v391
    %v393 = vmul.f32 %v208, 1.442695
    %v394 = vpow.pop %v393
    %v395 = vmul.f32 %v209, 1.442695
    %v396 = vpow.pop %v395
    %v397 = vmul.f32 %v210, 1.442695
    %v398 = vpow.pop %v397
    %v399 = vmul.f32 %v211, 1.442695
    %v400 = vpow.pop %v399
    %v401 = vmul.f32 %v212, 1.442695
    %v402 = vpow.pop %v401
    %v403 = vmul.f32 %v213, 1.442695
    %v404 = vpow.pop %v403
    %v405 = vmul.f32 %v214, 1.442695
    %v406 = vpow.pop %v405
    %v407 = vmul.f32 %v215, 1.442695
    %v408 = vpow.pop %v407
    %v409 = vmul.f32 %v216, 1.442695
    %v410 = vpow.pop %v409
    %v411 = vmul.f32 %v217, 1.442695
    %v412 = vpow.pop %v411
    %v413 = vmul.f32 %v218, 1.442695
    %v414 = vpow.pop %v413
    %v415 = vmul.f32 %v219, 1.442695
    %v416 = vpow.pop %v415
    %v417 = vmul.f32 %v220, 1.442695
    %v418 = vpow.pop %v417
    %v419 = vmul.f32 %v221, 1.442695
    %v420 = vpow.pop %v419
    %v421 = vmul.f32 %v222, 1.442695
    %v422 = vpow.pop %v421
    %v423 = vmul.f32 %v223, 1.442695
    %v424 = vpow.pop %v423
    %v425 = vmul.f32 %v224, 1.442695
    %v426 = vpow.pop %v425
    %v427 = vmul.f32 %v225, 1.442695
    %v428 = vpow.pop %v427
    %v429 = vmul.f32 %v226, 1.442695
    %v430 = vpow.pop %v429
    %v431 = vmul.f32 %v227, 1.442695
    %v432 = vpow.pop %v431
    %v433 = vmul.f32 %v228, 1.442695
    %v434 = vpow.pop %v433
    %v435 = vmul.f32 %v229, 1.442695
    %v436 = vpow.pop %v435
    %v437 = vmul.f32 %v230, 1.442695
    %v438 = vpow.pop %v437
    %v439 = vmul.f32 %v231, 1.442695
    %v440 = vpow.pop %v439
    %v441 = vmul.f32 %v232, 1.442695
    %v442 = vpow.pop %v441
    %v443 = vmul.f32 %v233, 1.442695
    %v444 = vpow.pop %v443
    %v445 = vmul.f32 %v234, 1.442695
    %v446 = vpow.pop %v445
    %v447 = vmul.f32 %v235, 1.442695
    %v448 = vpow.pop %v447
    %v449 = vmul.f32 %v236, 1.442695
    %v450 = vpow.pop %v449
    %v451 = vmul.f32 %v237, 1.442695
    %v452 = vpow.pop %v451
    %v453 = vmul.f32 %v238, 1.442695
    %v454 = vpow.pop %v453
    %v455 = vmul.f32 %v239, 1.442695
    %v456 = vpow.pop %v455
    %v457 = vmul.f32 %v240, 1.442695
    %v458 = vpow.pop %v457
    %v459 = vmul.f32 %v241, 1.442695
    %v460 = vpow.pop %v459
    %v461 = vmul.f32 %v242, 1.442695
    %v462 = vpow.pop %v461
    %v463 = vmul.f32 %v243, 1.442695
    %v464 = vpow.pop %v463
    %v465 = vmul.f32 %v244, 1.442695
    %v466 = vpow.pop %v465
    %v467 = vmul.f32 %v245, 1.442695
    %v468 = vpow.pop %v467
    %v469 = vmul.f32 %v246, 1.442695
    %v470 = vpow.pop %v469
    %v471 = vmul.f32 %v247, 1.442695
    %v472 = vpow.pop %v471
    %v473 = vmul.f32 %v248, 1.442695
    %v474 = vpow.pop %v473
    %v475 = vmul.f32 %v249, 1.442695
    %v476 = vpow.pop %v475
    %v477 = vmul.f32 %v250, 1.442695
    %v478 = vpow.pop %v477
    %v479 = vmul.f32 %v251, 1.442695
    %v480 = vpow.pop %v479
    %v481 = vmul.f32 %v252, 1.442695
    %v482 = vpow.pop %v481
    %v483 = vmul.f32 %v253, 1.442695
    %v484 = vpow.pop %v483
    %v485 = vmul.f32 %v254, 1.442695
    %v486 = vpow.pop %v485
    %v487 = vmul.f32 %v255, 1.442695
    %v488 = vpow.pop %v487
    %v489 = vmul.f32 %v256, 1.442695
    %v490 = vpow.pop %v489
    %v491 = vmul.f32 %v257, 1.442695
    %v492 = vpow.pop %v491
    %v493 = vmul.f32 %v258, 1.442695
    %v494 = vpow.pop %v493
    %v495 = vmul.f32 %v259, 1.442695
    %v496 = vpow.pop %v495
    %v497 = vmul.f32 %v260, 1.442695
    %v498 = vpow.pop %v497
    %v499 = vmul.f32 %v261, 1.442695
    %v500 = vpow.pop %v499
    %v501 = vmul.f32 %v262, 1.442695
    %v502 = vpow.pop %v501
    %v503 = vmul.f32 %v263, 1.442695
    %v504 = vpow.pop %v503
    %v505 = vmul.f32 %v264, 1.442695
    %v506 = vpow.pop %v505
    %v507 = vmul.f32 %v265, 1.442695
    %v508 = vpow.pop %v507
    %v509 = vmul.f32 %v266, 1.442695
    %v510 = vpow.pop %v509
    %v511 = vmul.f32 %v267, 1.442695
    %v512 = vpow.pop %v511
    %v513 = vmul.f32 %v268, 1.442695
    %v514 = vpow.pop %v513
    %v515 = vmul.f32 %v269, 1.442695
    %v516 = vpow.pop %v515
    %v517 = vmul.f32 %v270, 1.442695
    %v518 = vpow.pop %v517
    %v519 = vmul.f32 %v271, 1.442695
    %v520 = vpow.pop %v519
    %v521 = vmul.f32 %v272, 1.442695
    %v522 = vpow.pop %v521
    %v523 = vmul.f32 %v273, 1.442695
    %v524 = vpow.pop %v523
    %v525 = vmul.f32 %v274, 1.442695
    %v526 = vpow.pop %v525
    %v527 = vmul.f32 %v275, 1.442695
    %v528 = vpow.pop %v527
    %v529 = vmul.f32 %v276, 1.442695
    %v530 = vpow.pop %v529
    %v531 = vmul.f32 %v277, 1.442695
    %v532 = vpow.pop %v531
    %v533 = vmul.f32 %v278, 1.442695
    %v534 = vpow.pop %v533
    %v535 = vadd.f32 %v280, 1.0
    %v536 = vadd.f32 %v282, 1.0
    %v537 = vadd.f32 %v284, 1.0
    %v538 = vadd.f32 %v286, 1.0
    %v539 = vadd.f32 %v288, 1.0
    %v540 = vadd.f32 %v290, 1.0
    %v541 = vadd.f32 %v292, 1.0
    %v542 = vadd.f32 %v294, 1.0
    %v543 = vadd.f32 %v296, 1.0
    %v544 = vadd.f32 %v298, 1.0
    %v545 = vadd.f32 %v300, 1.0
    %v546 = vadd.f32 %v302, 1.0
    %v547 = vadd.f32 %v304, 1.0
    %v548 = vadd.f32 %v306, 1.0
    %v549 = vadd.f32 %v308, 1.0
    %v550 = vadd.f32 %v310, 1.0
    %v551 = vadd.f32 %v312, 1.0
    %v552 = vadd.f32 %v314, 1.0
    %v553 = vadd.f32 %v316, 1.0
    %v554 = vadd.f32 %v318, 1.0
    %v555 = vadd.f32 %v320, 1.0
    %v556 = vadd.f32 %v322, 1.0
    %v557 = vadd.f32 %v324, 1.0
    %v558 = vadd.f32 %v326, 1.0
    %v559 = vadd.f32 %v328, 1.0
    %v560 = vadd.f32 %v330, 1.0
    %v561 = vadd.f32 %v332, 1.0
    %v562 = vadd.f32 %v334, 1.0
    %v563 = vadd.f32 %v336, 1.0
    %v564 = vadd.f32 %v338, 1.0
    %v565 = vadd.f32 %v340, 1.0
    %v566 = vadd.f32 %v342, 1.0
    %v567 = vadd.f32 %v344, 1.0
    %v568 = vadd.f32 %v346, 1.0
    %v569 = vadd.f32 %v348, 1.0
    %v570 = vadd.f32 %v350, 1.0
    %v571 = vadd.f32 %v352, 1.0
    %v572 = vadd.f32 %v354, 1.0
    %v573 = vadd.f32 %v356, 1.0
    %v574 = vadd.f32 %v358, 1.0
    %v575 = vadd.f32 %v360, 1.0
    %v576 = vadd.f32 %v362, 1.0
    %v577 = vadd.f32 %v364, 1.0
    %v578 = vadd.f32 %v366, 1.0
    %v579 = vadd.f32 %v368, 1.0
    %v580 = vadd.f32 %v370, 1.0
    %v581 = vadd.f32 %v372, 1.0
    %v582 = vadd.f32 %v374, 1.0
    %v583 = vadd.f32 %v376, 1.0
    %v584 = vadd.f32 %v378, 1.0
    %v585 = vadd.f32 %v380, 1.0
    %v586 = vadd.f32 %v382, 1.0
    %v587 = vadd.f32 %v384, 1.0
    %v588 = vadd.f32 %v386, 1.0
    %v589 = vadd.f32 %v388, 1.0
    %v590 = vadd.f32 %v390, 1.0
    %v591 = vadd.f32 %v392, 1.0
    %v592 = vadd.f32 %v394, 1.0
    %v593 = vadd.f32 %v396, 1.0
    %v594 = vadd.f32 %v398, 1.0
    %v595 = vadd.f32 %v400, 1.0
    %v596 = vadd.f32 %v402, 1.0
    %v597 = vadd.f32 %v404, 1.0
    %v598 = vadd.f32 %v406, 1.0
    %v599 = vadd.f32 %v408, 1.0
    %v600 = vadd.f32 %v410, 1.0
    %v601 = vadd.f32 %v412, 1.0
    %v602 = vadd.f32 %v414, 1.0
    %v603 = vadd.f32 %v416, 1.0
    %v604 = vadd.f32 %v418, 1.0
    %v605 = vadd.f32 %v420, 1.0
    %v606 = vadd.f32 %v422, 1.0
    %v607 = vadd.f32 %v424, 1.0
    %v608 = vadd.f32 %v426, 1.0
    %v609 = vadd.f32 %v428, 1.0
    %v610 = vadd.f32 %v430, 1.0
    %v611 = vadd.f32 %v432, 1.0
    %v612 = vadd.f32 %v434, 1.0
    %v613 = vadd.f32 %v436, 1.0
    %v614 = vadd.f32 %v438, 1.0
    %v615 = vadd.f32 %v440, 1.0
    %v616 = vadd.f32 %v442, 1.0
    %v617 = vadd.f32 %v444, 1.0
    %v618 = vadd.f32 %v446, 1.0
    %v619 = vadd.f32 %v448, 1.0
    %v620 = vadd.f32 %v450, 1.0
    %v621 = vadd.f32 %v452, 1.0
    %v622 = vadd.f32 %v454, 1.0
    %v623 = vadd.f32 %v456, 1.0
    %v624 = vadd.f32 %v458, 1.0
    %v625 = vadd.f32 %v460, 1.0
    %v626 = vadd.f32 %v462, 1.0
    %v627 = vadd.f32 %v464, 1.0
    %v628 = vadd.f32 %v466, 1.0
    %v629 = vadd.f32 %v468, 1.0
    %v630 = vadd.f32 %v470, 1.0
    %v631 = vadd.f32 %v472, 1.0
    %v632 = vadd.f32 %v474, 1.0
    %v633 = vadd.f32 %v476, 1.0
    %v634 = vadd.f32 %v478, 1.0
    %v635 = vadd.f32 %v480, 1.0
    %v636 = vadd.f32 %v482, 1.0
    %v637 = vadd.f32 %v484, 1.0
    %v638 = vadd.f32 %v486, 1.0
    %v639 = vadd.f32 %v488, 1.0
    %v640 = vadd.f32 %v490, 1.0
    %v641 = vadd.f32 %v492, 1.0
    %v642 = vadd.f32 %v494, 1.0
    %v643 = vadd.f32 %v496, 1.0
    %v644 = vadd.f32 %v498, 1.0
    %v645 = vadd.f32 %v500, 1.0
    %v646 = vadd.f32 %v502, 1.0
    %v647 = vadd.f32 %v504, 1.0
    %v648 = vadd.f32 %v506, 1.0
    %v649 = vadd.f32 %v508, 1.0
    %v650 = vadd.f32 %v510, 1.0
    %v651 = vadd.f32 %v512, 1.0
    %v652 = vadd.f32 %v514, 1.0
    %v653 = vadd.f32 %v516, 1.0
    %v654 = vadd.f32 %v518, 1.0
    %v655 = vadd.f32 %v520, 1.0
    %v656 = vadd.f32 %v522, 1.0
    %v657 = vadd.f32 %v524, 1.0
    %v658 = vadd.f32 %v526, 1.0
    %v659 = vadd.f32 %v528, 1.0
    %v660 = vadd.f32 %v530, 1.0
    %v661 = vadd.f32 %v532, 1.0
    %v662 = vadd.f32 %v534, 1.0
    %v663 = vrcp.pop %v535
    %v664 = vmul.f32 1.0, %v663
    %v665 = vrcp.pop %v536
    %v666 = vmul.f32 1.0, %v665
    %v667 = vrcp.pop %v537
    %v668 = vmul.f32 1.0, %v667
    %v669 = vrcp.pop %v538
    %v670 = vmul.f32 1.0, %v669
    %v671 = vrcp.pop %v539
    %v672 = vmul.f32 1.0, %v671
    %v673 = vrcp.pop %v540
    %v674 = vmul.f32 1.0, %v673
    %v675 = vrcp.pop %v541
    %v676 = vmul.f32 1.0, %v675
    %v677 = vrcp.pop %v542
    %v678 = vmul.f32 1.0, %v677
    %v679 = vrcp.pop %v543
    %v680 = vmul.f32 1.0, %v679
    %v681 = vrcp.pop %v544
    %v682 = vmul.f32 1.0, %v681
    %v683 = vrcp.pop %v545
    %v684 = vmul.f32 1.0, %v683
    %v685 = vrcp.pop %v546
    %v686 = vmul.f32 1.0, %v685
    %v687 = vrcp.pop %v547
    %v688 = vmul.f32 1.0, %v687
    %v689 = vrcp.pop %v548
    %v690 = vmul.f32 1.0, %v689
    %v691 = vrcp.pop %v549
    %v692 = vmul.f32 1.0, %v691
    %v693 = vrcp.pop %v550
    %v694 = vmul.f32 1.0, %v693
    %v695 = vrcp.pop %v551
    %v696 = vmul.f32 1.0, %v695
    %v697 = vrcp.pop %v552
    %v698 = vmul.f32 1.0, %v697
    %v699 = vrcp.pop %v553
    %v700 = vmul.f32 1.0, %v699
    %v701 = vrcp.pop %v554
    %v702 = vmul.f32 1.0, %v701
    %v703 = vrcp.pop %v555
    %v704 = vmul.f32 1.0, %v703
    %v705 = vrcp.pop %v556
    %v706 = vmul.f32 1.0, %v705
    %v707 = vrcp.pop %v557
    %v708 = vmul.f32 1.0, %v707
    %v709 = vrcp.pop %v558
    %v710 = vmul.f32 1.0, %v709
    %v711 = vrcp.pop %v559
    %v712 = vmul.f32 1.0, %v711
    %v713 = vrcp.pop %v560
    %v714 = vmul.f32 1.0, %v713
    %v715 = vrcp.pop %v561
    %v716 = vmul.f32 1.0, %v715
    %v717 = vrcp.pop %v562
    %v718 = vmul.f32 1.0, %v717
    %v719 = vrcp.pop %v563
    %v720 = vmul.f32 1.0, %v719
    %v721 = vrcp.pop %v564
    %v722 = vmul.f32 1.0, %v721
    %v723 = vrcp.pop %v565
    %v724 = vmul.f32 1.0, %v723
    %v725 = vrcp.pop %v566
    %v726 = vmul.f32 1.0, %v725
    %v727 = vrcp.pop %v567
    %v728 = vmul.f32 1.0, %v727
    %v729 = vrcp.pop %v568
    %v730 = vmul.f32 1.0, %v729
    %v731 = vrcp.pop %v569
    %v732 = vmul.f32 1.0, %v731
    %v733 = vrcp.pop %v570
    %v734 = vmul.f32 1.0, %v733
    %v735 = vrcp.pop %v571
    %v736 = vmul.f32 1.0, %v735
    %v737 = vrcp.pop %v572
    %v738 = vmul.f32 1.0, %v737
    %v739 = vrcp.pop %v573
    %v740 = vmul.f32 1.0, %v739
    %v741 = vrcp.pop %v574
    %v742 = vmul.f32 1.0, %v741
    %v743 = vrcp.pop %v575
    %v744 = vmul.f32 1.0, %v743
    %v745 = vrcp.pop %v576
    %v746 = vmul.f32 1.0, %v745
    %v747 = vrcp.pop %v577
    %v748 = vmul.f32 1.0, %v747
    %v749 = vrcp.pop %v578
    %v750 = vmul.f32 1.0, %v749
    %v751 = vrcp.pop %v579
    %v752 = vmul.f32 1.0, %v751
    %v753 = vrcp.pop %v580
    %v754 = vmul.f32 1.0, %v753
    %v755 = vrcp.pop %v581
    %v756 = vmul.f32 1.0, %v755
    %v757 = vrcp.pop %v582
    %v758 = vmul.f32 1.0, %v757
    %v759 = vrcp.pop %v583
    %v760 = vmul.f32 1.0, %v759
    %v761 = vrcp.pop %v584
    %v762 = vmul.f32 1.0, %v761
    %v763 = vrcp.pop %v585
    %v764 = vmul.f32 1.0, %v763
    %v765 = vrcp.pop %v586
    %v766 = vmul.f32 1.0, %v765
    %v767 = vrcp.pop %v587
    %v768 = vmul.f32 1.0, %v767
    %v769 = vrcp.pop %v588
    %v770 = vmul.f32 1.0, %v769
    %v771 = vrcp.pop %v589
    %v772 = vmul.f32 1.0, %v771
    %v773 = vrcp.pop %v590
    %v774 = vmul.f32 1.0, %v773
    %v775 = vrcp.pop %v591
    %v776 = vmul.f32 1.0, %v775
    %v777 = vrcp.pop %v592
    %v778 = vmul.f32 1.0, %v777
    %v779 = vrcp.pop %v593
    %v780 = vmul.f32 1.0, %v779
    %v781 = vrcp.pop %v594
    %v782 = vmul.f32 1.0, %v781
    %v783 = vrcp.pop %v595
    %v784 = vmul.f32 1.0, %v783
    %v785 = vrcp.pop %v596
    %v786 = vmul.f32 1.0, %v785
    %v787 = vrcp.pop %v597
    %v788 = vmul.f32 1.0, %v787
    %v789 = vrcp.pop %v598
    %v790 = vmul.f32 1.0, %v789
    %v791 = vrcp.pop %v599
    %v792 = vmul.f32 1.0, %v791
    %v793 = vrcp.pop %v600
    %v794 = vmul.f32 1.0, %v793
    %v795 = vrcp.pop %v601
    %v796 = vmul.f32 1.0, %v795
    %v797 = vrcp.pop %v602
    %v798 = vmul.f32 1.0, %v797
    %v799 = vrcp.pop %v603
    %v800 = vmul.f32 1.0, %v799
    %v801 = vrcp.pop %v604
    %v802 = vmul.f32 1.0, %v801
    %v803 = vrcp.pop %v605
    %v804 = vmul.f32 1.0, %v803
    %v805 = vrcp.pop %v606
    %v806 = vmul.f32 1.0, %v805
    %v807 = vrcp.pop %v607
    %v808 = vmul.f32 1.0, %v807
    %v809 = vrcp.pop %v608
    %v810 = vmul.f32 1.0, %v809
    %v811 = vrcp.pop %v609
    %v812 = vmul.f32 1.0, %v811
    %v813 = vrcp.pop %v610
    %v814 = vmul.f32 1.0, %v813
    %v815 = vrcp.pop %v611
    %v816 = vmul.f32 1.0, %v815
    %v817 = vrcp.pop %v612
    %v818 = vmul.f32 1.0, %v817
    %v819 = vrcp.pop %v613
    %v820 = vmul.f32 1.0, %v819
    %v821 = vrcp.pop %v614
    %v822 = vmul.f32 1.0, %v821
    %v823 = vrcp.pop %v615
    %v824 = vmul.f32 1.0, %v823
    %v825 = vrcp.pop %v616
    %v826 = vmul.f32 1.0, %v825
    %v827 = vrcp.pop %v617
    %v828 = vmul.f32 1.0, %v827
    %v829 = vrcp.pop %v618
    %v830 = vmul.f32 1.0, %v829
    %v831 = vrcp.pop %v619
    %v832 = vmul.f32 1.0, %v831
    %v833 = vrcp.pop %v620
    %v834 = vmul.f32 1.0, %v833
    %v835 = vrcp.pop %v621
    %v836 = vmul.f32 1.0, %v835
    %v837 = vrcp.pop %v622
    %v838 = vmul.f32 1.0, %v837
    %v839 = vrcp.pop %v623
    %v840 = vmul.f32 1.0, %v839
    %v841 = vrcp.pop %v624
    %v842 = vmul.f32 1.0, %v841
    %v843 = vrcp.pop %v625
    %v844 = vmul.f32 1.0, %v843
    %v845 = vrcp.pop %v626
    %v846 = vmul.f32 1.0, %v845
    %v847 = vrcp.pop %v627
    %v848 = vmul.f32 1.0, %v847
    %v849 = vrcp.pop %v628
    %v850 = vmul.f32 1.0, %v849
    %v851 = vrcp.pop %v629
    %v852 = vmul.f32 1.0, %v851
    %v853 = vrcp.pop %v630
    %v854 = vmul.f32 1.0, %v853
    %v855 = vrcp.pop %v631
    %v856 = vmul.f32 1.0, %v855
    %v857 = vrcp.pop %v632
    %v858 = vmul.f32 1.0, %v857
    %v859 = vrcp.pop %v633
    %v860 = vmul.f32 1.0, %v859
    %v861 = vrcp.pop %v634
    %v862 = vmul.f32 1.0, %v861
    %v863 = vrcp.pop %v635
    %v864 = vmul.f32 1.0, %v863
    %v865 = vrcp.pop %v636
    %v866 = vmul.f32 1.0, %v865
    %v867 = vrcp.pop %v637
    %v868 = vmul.f32 1.0, %v867
    %v869 = vrcp.pop %v638
    %v870 = vmul.f32 1.0, %v869
    %v871 = vrcp.pop %v639
    %v872 = vmul.f32 1.0, %v871
    %v873 = vrcp.pop %v640
    %v874 = vmul.f32 1.0, %v873
    %v875 = vrcp.pop %v641
    %v876 = vmul.f32 1.0, %v875
    %v877 = vrcp.pop %v642
    %v878 = vmul.f32 1.0, %v877
    %v879 = vrcp.pop %v643
    %v880 = vmul.f32 1.0, %v879
    %v881 = vrcp.pop %v644
    %v882 = vmul.f32 1.0, %v881
    %v883 = vrcp.pop %v645
    %v884 = vmul.f32 1.0, %v883
    %v885 = vrcp.pop %v646
    %v886 = vmul.f32 1.0, %v885
    %v887 = vrcp.pop %v647
    %v888 = vmul.f32 1.0, %v887
    %v889 = vrcp.pop %v648
    %v890 = vmul.f32 1.0, %v889
    %v891 = vrcp.pop %v649
    %v892 = vmul.f32 1.0, %v891
    %v893 = vrcp.pop %v650
    %v894 = vmul.f32 1.0, %v893
    %v895 = vrcp.pop %v651
    %v896 = vmul.f32 1.0, %v895
    %v897 = vrcp.pop %v652
    %v898 = vmul.f32 1.0, %v897
    %v899 = vrcp.pop %v653
    %v900 = vmul.f32 1.0, %v899
    %v901 = vrcp.pop %v654
    %v902 = vmul.f32 1.0, %v901
    %v903 = vrcp.pop %v655
    %v904 = vmul.f32 1.0, %v903
    %v905 = vrcp.pop %v656
    %v906 = vmul.f32 1.0, %v905
    %v907 = vrcp.pop %v657
    %v908 = vmul.f32 1.0, %v907
    %v909 = vrcp.pop %v658
    %v910 = vmul.f32 1.0, %v909
    %v911 = vrcp.pop %v659
    %v912 = vmul.f32 1.0, %v911
    %v913 = vrcp.pop %v660
    %v914 = vmul.f32 1.0, %v913
    %v915 = vrcp.pop %v661
    %v916 = vmul.f32 1.0, %v915
    %v917 = vrcp.pop %v662
    %v918 = vmul.f32 1.0, %v917
    %v919 = vmul.f32 %v23, %v664
    %v920 = vmul.f32 %v24, %v666
    %v921 = vmul.f32 %v25, %v668
    %v922 = vmul.f32 %v26, %v670
    %v923 = vmul.f32 %v27, %v672
    %v924 = vmul.f32 %v28, %v674
    %v925 = vmul.f32 %v29, %v676
    %v926 = vmul.f32 %v30, %v678
    %v927 = vmul.f32 %v31, %v680
    %v928 = vmul.f32 %v32, %v682
    %v929 = vmul.f32 %v33, %v684
    %v930 = vmul.f32 %v34, %v686
    %v931 = vmul.f32 %v35, %v688
    %v932 = vmul.f32 %v36, %v690
    %v933 = vmul.f32 %v37, %v692
    %v934 = vmul.f32 %v38, %v694
    %v935 = vmul.f32 %v39, %v696
    %v936 = vmul.f32 %v40, %v698
    %v937 = vmul.f32 %v41, %v700
    %v938 = vmul.f32 %v42, %v702
    %v939 = vmul.f32 %v43, %v704
    %v940 = vmul.f32 %v44, %v706
    %v941 = vmul.f32 %v45, %v708
    %v942 = vmul.f32 %v46, %v710
    %v943 = vmul.f32 %v47, %v712
    %v944 = vmul.f32 %v48, %v714
    %v945 = vmul.f32 %v49, %v716
    %v946 = vmul.f32 %v50, %v718
    %v947 = vmul.f32 %v51, %v720
    %v948 = vmul.f32 %v52, %v722
    %v949 = vmul.f32 %v53, %v724
    %v950 = vmul.f32 %v54, %v726
    %v951 = vmul.f32 %v55, %v728
    %v952 = vmul.f32 %v56, %v730
    %v953 = vmul.f32 %v57, %v732
    %v954 = vmul.f32 %v58, %v734
    %v955 = vmul.f32 %v59, %v736
    %v956 = vmul.f32 %v60, %v738
    %v957 = vmul.f32 %v61, %v740
    %v958 = vmul.f32 %v62, %v742
    %v959 = vmul.f32 %v63, %v744
    %v960 = vmul.f32 %v64, %v746
    %v961 = vmul.f32 %v65, %v748
    %v962 = vmul.f32 %v66, %v750
    %v963 = vmul.f32 %v67, %v752
    %v964 = vmul.f32 %v68, %v754
    %v965 = vmul.f32 %v69, %v756
    %v966 = vmul.f32 %v70, %v758
    %v967 = vmul.f32 %v71, %v760
    %v968 = vmul.f32 %v72, %v762
    %v969 = vmul.f32 %v73, %v764
    %v970 = vmul.f32 %v74, %v766
    %v971 = vmul.f32 %v75, %v768
    %v972 = vmul.f32 %v76, %v770
    %v973 = vmul.f32 %v77, %v772
    %v974 = vmul.f32 %v78, %v774
    %v975 = vmul.f32 %v79, %v776
    %v976 = vmul.f32 %v80, %v778
    %v977 = vmul.f32 %v81, %v780
    %v978 = vmul.f32 %v82, %v782
    %v979 = vmul.f32 %v83, %v784
    %v980 = vmul.f32 %v84, %v786
    %v981 = vmul.f32 %v85, %v788
    %v982 = vmul.f32 %v86, %v790
    %v983 = vmul.f32 %v87, %v792
    %v984 = vmul.f32 %v88, %v794
    %v985 = vmul.f32 %v89, %v796
    %v986 = vmul.f32 %v90, %v798
    %v987 = vmul.f32 %v91, %v800
    %v988 = vmul.f32 %v92, %v802
    %v989 = vmul.f32 %v93, %v804
    %v990 = vmul.f32 %v94, %v806
    %v991 = vmul.f32 %v95, %v808
    %v992 = vmul.f32 %v96, %v810
    %v993 = vmul.f32 %v97, %v812
    %v994 = vmul.f32 %v98, %v814
    %v995 = vmul.f32 %v99, %v816
    %v996 = vmul.f32 %v100, %v818
    %v997 = vmul.f32 %v101, %v820
    %v998 = vmul.f32 %v102, %v822
    %v999 = vmul.f32 %v103, %v824
    %v1000 = vmul.f32 %v104, %v826
    %v1001 = vmul.f32 %v105, %v828
    %v1002 = vmul.f32 %v106, %v830
    %v1003 = vmul.f32 %v107, %v832
    %v1004 = vmul.f32 %v108, %v834
    %v1005 = vmul.f32 %v109, %v836
    %v1006 = vmul.f32 %v110, %v838
    %v1007 = vmul.f32 %v111, %v840
    %v1008 = vmul.f32 %v112, %v842
    %v1009 = vmul.f32 %v113, %v844
    %v1010 = vmul.f32 %v114, %v846
    %v1011 = vmul.f32 %v115, %v848
    %v1012 = vmul.f32 %v116, %v850
    %v1013 = vmul.f32 %v117, %v852
    %v1014 = vmul.f32 %v118, %v854
    %v1015 = vmul.f32 %v119, %v856
    %v1016 = vmul.f32 %v120, %v858
    %v1017 = vmul.f32 %v121, %v860
    %v1018 = vmul.f32 %v122, %v862
    %v1019 = vmul.f32 %v123, %v864
    %v1020 = vmul.f32 %v124, %v866
    %v1021 = vmul.f32 %v125, %v868
    %v1022 = vmul.f32 %v126, %v870
    %v1023 = vmul.f32 %v127, %v872
    %v1024 = vmul.f32 %v128, %v874
    %v1025 = vmul.f32 %v129, %v876
    %v1026 = vmul.f32 %v130, %v878
    %v1027 = vmul.f32 %v131, %v880
    %v1028 = vmul.f32 %v132, %v882
    %v1029 = vmul.f32 %v133, %v884
    %v1030 = vmul.f32 %v134, %v886
    %v1031 = vmul.f32 %v135, %v888
    %v1032 = vmul.f32 %v136, %v890
    %v1033 = vmul.f32 %v137, %v892
    %v1034 = vmul.f32 %v138, %v894
    %v1035 = vmul.f32 %v139, %v896
    %v1036 = vmul.f32 %v140, %v898
    %v1037 = vmul.f32 %v141, %v900
    %v1038 = vmul.f32 %v142, %v902
    %v1039 = vmul.f32 %v143, %v904
    %v1040 = vmul.f32 %v144, %v906
    %v1041 = vmul.f32 %v145, %v908
    %v1042 = vmul.f32 %v146, %v910
    %v1043 = vmul.f32 %v147, %v912
    %v1044 = vmul.f32 %v148, %v914
    %v1045 = vmul.f32 %v149, %v916
    %v1046 = vmul.f32 %v150, %v918
    %1047 = vst [vmem:[#allocation5] sm:$0xff] %v919
    %1048 = vst [vmem:[#allocation5 + $0x8] sm:$0xff] %v920
    %1049 = vst [vmem:[#allocation5 + $0x10] sm:$0xff] %v921
    %1050 = vst [vmem:[#allocation5 + $0x18] sm:$0xff] %v922
    %1051 = vst [vmem:[#allocation5 + $0x20] sm:$0xff] %v923
    %1052 = vst [vmem:[#allocation5 + $0x28] sm:$0xff] %v924
    %1053 = vst [vmem:[#allocation5 + $0x30] sm:$0xff] %v925
    %1054 = vst [vmem:[#allocation5 + $0x38] sm:$0xff] %v926
    %1055 = vst [vmem:[#allocation5 + $0x40] sm:$0xff] %v927
    %1056 = vst [vmem:[#allocation5 + $0x48] sm:$0xff] %v928
    %1057 = vst [vmem:[#allocation5 + $0x50] sm:$0xff] %v929
    %1058 = vst [vmem:[#allocation5 + $0x58] sm:$0xff] %v930
    %1059 = vst [vmem:[#allocation5 + $0x60] sm:$0xff] %v931
    %1060 = vst [vmem:[#allocation5 + $0x68] sm:$0xff] %v932
    %1061 = vst [vmem:[#allocation5 + $0x70] sm:$0xff] %v933
    %1062 = vst [vmem:[#allocation5 + $0x78] sm:$0xff] %v934
    %1063 = vst [vmem:[#allocation5 + $0x80] sm:$0xff] %v935
    %1064 = vst [vmem:[#allocation5 + $0x88] sm:$0xff] %v936
    %1065 = vst [vmem:[#allocation5 + $0x90] sm:$0xff] %v937
    %1066 = vst [vmem:[#allocation5 + $0x98] sm:$0xff] %v938
    %1067 = vst [vmem:[#allocation5 + $0xa0] sm:$0xff] %v939
    %1068 = vst [vmem:[#allocation5 + $0xa8] sm:$0xff] %v940
    %1069 = vst [vmem:[#allocation5 + $0xb0] sm:$0xff] %v941
    %1070 = vst [vmem:[#allocation5 + $0xb8] sm:$0xff] %v942
    %1071 = vst [vmem:[#allocation5 + $0xc0] sm:$0xff] %v943
    %1072 = vst [vmem:[#allocation5 + $0xc8] sm:$0xff] %v944
    %1073 = vst [vmem:[#allocation5 + $0xd0] sm:$0xff] %v945
    %1074 = vst [vmem:[#allocation5 + $0xd8] sm:$0xff] %v946
    %1075 = vst [vmem:[#allocation5 + $0xe0] sm:$0xff] %v947
    %1076 = vst [vmem:[#allocation5 + $0xe8] sm:$0xff] %v948
    %1077 = vst [vmem:[#allocation5 + $0xf0] sm:$0xff] %v949
    %1078 = vst [vmem:[#allocation5 + $0xf8] sm:$0xff] %v950
    %1079 = vst [vmem:[#allocation5 + $0x100] sm:$0xff] %v951
    %1080 = vst [vmem:[#allocation5 + $0x108] sm:$0xff] %v952
    %1081 = vst [vmem:[#allocation5 + $0x110] sm:$0xff] %v953
    %1082 = vst [vmem:[#allocation5 + $0x118] sm:$0xff] %v954
    %1083 = vst [vmem:[#allocation5 + $0x120] sm:$0xff] %v955
    %1084 = vst [vmem:[#allocation5 + $0x128] sm:$0xff] %v956
    %1085 = vst [vmem:[#allocation5 + $0x130] sm:$0xff] %v957
    %1086 = vst [vmem:[#allocation5 + $0x138] sm:$0xff] %v958
    %1087 = vst [vmem:[#allocation5 + $0x140] sm:$0xff] %v959
    %1088 = vst [vmem:[#allocation5 + $0x148] sm:$0xff] %v960
    %1089 = vst [vmem:[#allocation5 + $0x150] sm:$0xff] %v961
    %1090 = vst [vmem:[#allocation5 + $0x158] sm:$0xff] %v962
    %1091 = vst [vmem:[#allocation5 + $0x160] sm:$0xff] %v963
    %1092 = vst [vmem:[#allocation5 + $0x168] sm:$0xff] %v964
    %1093 = vst [vmem:[#allocation5 + $0x170] sm:$0xff] %v965
    %1094 = vst [vmem:[#allocation5 + $0x178] sm:$0xff] %v966
    %1095 = vst [vmem:[#allocation5 + $0x180] sm:$0xff] %v967
    %1096 = vst [vmem:[#allocation5 + $0x188] sm:$0xff] %v968
    %1097 = vst [vmem:[#allocation5 + $0x190] sm:$0xff] %v969
    %1098 = vst [vmem:[#allocation5 + $0x198] sm:$0xff] %v970
    %1099 = vst [vmem:[#allocation5 + $0x1a0] sm:$0xff] %v971
    %1100 = vst [vmem:[#allocation5 + $0x1a8] sm:$0xff] %v972
    %1101 = vst [vmem:[#allocation5 + $0x1b0] sm:$0xff] %v973
    %1102 = vst [vmem:[#allocation5 + $0x1b8] sm:$0xff] %v974
    %1103 = vst [vmem:[#allocation5 + $0x1c0] sm:$0xff] %v975
    %1104 = vst [vmem:[#allocation5 + $0x1c8] sm:$0xff] %v976
    %1105 = vst [vmem:[#allocation5 + $0x1d0] sm:$0xff] %v977
    %1106 = vst [vmem:[#allocation5 + $0x1d8] sm:$0xff] %v978
    %1107 = vst [vmem:[#allocation5 + $0x1e0] sm:$0xff] %v979
    %1108 = vst [vmem:[#allocation5 + $0x1e8] sm:$0xff] %v980
    %1109 = vst [vmem:[#allocation5 + $0x1f0] sm:$0xff] %v981
    %1110 = vst [vmem:[#allocation5 + $0x1f8] sm:$0xff] %v982
    %1111 = vst [vmem:[#allocation5 + $0x200] sm:$0xff] %v983
    %1112 = vst [vmem:[#allocation5 + $0x208] sm:$0xff] %v984
    %1113 = vst [vmem:[#allocation5 + $0x210] sm:$0xff] %v985
    %1114 = vst [vmem:[#allocation5 + $0x218] sm:$0xff] %v986
    %1115 = vst [vmem:[#allocation5 + $0x220] sm:$0xff] %v987
    %1116 = vst [vmem:[#allocation5 + $0x228] sm:$0xff] %v988
    %1117 = vst [vmem:[#allocation5 + $0x230] sm:$0xff] %v989
    %1118 = vst [vmem:[#allocation5 + $0x238] sm:$0xff] %v990
    %1119 = vst [vmem:[#allocation5 + $0x240] sm:$0xff] %v991
    %1120 = vst [vmem:[#allocation5 + $0x248] sm:$0xff] %v992
    %1121 = vst [vmem:[#allocation5 + $0x250] sm:$0xff] %v993
    %1122 = vst [vmem:[#allocation5 + $0x258] sm:$0xff] %v994
    %1123 = vst [vmem:[#allocation5 + $0x260] sm:$0xff] %v995
    %1124 = vst [vmem:[#allocation5 + $0x268] sm:$0xff] %v996
    %1125 = vst [vmem:[#allocation5 + $0x270] sm:$0xff] %v997
    %1126 = vst [vmem:[#allocation5 + $0x278] sm:$0xff] %v998
    %1127 = vst [vmem:[#allocation5 + $0x280] sm:$0xff] %v999
    %1128 = vst [vmem:[#allocation5 + $0x288] sm:$0xff] %v1000
    %1129 = vst [vmem:[#allocation5 + $0x290] sm:$0xff] %v1001
    %1130 = vst [vmem:[#allocation5 + $0x298] sm:$0xff] %v1002
    %1131 = vst [vmem:[#allocation5 + $0x2a0] sm:$0xff] %v1003
    %1132 = vst [vmem:[#allocation5 + $0x2a8] sm:$0xff] %v1004
    %1133 = vst [vmem:[#allocation5 + $0x2b0] sm:$0xff] %v1005
    %1134 = vst [vmem:[#allocation5 + $0x2b8] sm:$0xff] %v1006
    %1135 = vst [vmem:[#allocation5 + $0x2c0] sm:$0xff] %v1007
    %1136 = vst [vmem:[#allocation5 + $0x2c8] sm:$0xff] %v1008
    %1137 = vst [vmem:[#allocation5 + $0x2d0] sm:$0xff] %v1009
    %1138 = vst [vmem:[#allocation5 + $0x2d8] sm:$0xff] %v1010
    %1139 = vst [vmem:[#allocation5 + $0x2e0] sm:$0xff] %v1011
    %1140 = vst [vmem:[#allocation5 + $0x2e8] sm:$0xff] %v1012
    %1141 = vst [vmem:[#allocation5 + $0x2f0] sm:$0xff] %v1013
    %1142 = vst [vmem:[#allocation5 + $0x2f8] sm:$0xff] %v1014
    %1143 = vst [vmem:[#allocation5 + $0x300] sm:$0xff] %v1015
    %1144 = vst [vmem:[#allocation5 + $0x308] sm:$0xff] %v1016
    %1145 = vst [vmem:[#allocation5 + $0x310] sm:$0xff] %v1017
    %1146 = vst [vmem:[#allocation5 + $0x318] sm:$0xff] %v1018
    %1147 = vst [vmem:[#allocation5 + $0x320] sm:$0xff] %v1019
    %1148 = vst [vmem:[#allocation5 + $0x328] sm:$0xff] %v1020
    %1149 = vst [vmem:[#allocation5 + $0x330] sm:$0xff] %v1021
    %1150 = vst [vmem:[#allocation5 + $0x338] sm:$0xff] %v1022
    %1151 = vst [vmem:[#allocation5 + $0x340] sm:$0xff] %v1023
    %1152 = vst [vmem:[#allocation5 + $0x348] sm:$0xff] %v1024
    %1153 = vst [vmem:[#allocation5 + $0x350] sm:$0xff] %v1025
    %1154 = vst [vmem:[#allocation5 + $0x358] sm:$0xff] %v1026
    %1155 = vst [vmem:[#allocation5 + $0x360] sm:$0xff] %v1027
    %1156 = vst [vmem:[#allocation5 + $0x368] sm:$0xff] %v1028
    %1157 = vst [vmem:[#allocation5 + $0x370] sm:$0xff] %v1029
    %1158 = vst [vmem:[#allocation5 + $0x378] sm:$0xff] %v1030
    %1159 = vst [vmem:[#allocation5 + $0x380] sm:$0xff] %v1031
    %1160 = vst [vmem:[#allocation5 + $0x388] sm:$0xff] %v1032
    %1161 = vst [vmem:[#allocation5 + $0x390] sm:$0xff] %v1033
    %1162 = vst [vmem:[#allocation5 + $0x398] sm:$0xff] %v1034
    %1163 = vst [vmem:[#allocation5 + $0x3a0] sm:$0xff] %v1035
    %1164 = vst [vmem:[#allocation5 + $0x3a8] sm:$0xff] %v1036
    %1165 = vst [vmem:[#allocation5 + $0x3b0] sm:$0xff] %v1037
    %1166 = vst [vmem:[#allocation5 + $0x3b8] sm:$0xff] %v1038
    %1167 = vst [vmem:[#allocation5 + $0x3c0] sm:$0xff] %v1039
    %1168 = vst [vmem:[#allocation5 + $0x3c8] sm:$0xff] %v1040
    %1169 = vst [vmem:[#allocation5 + $0x3d0] sm:$0xff] %v1041
    %1170 = vst [vmem:[#allocation5 + $0x3d8] sm:$0xff] %v1042
    %1171 = vst [vmem:[#allocation5 + $0x3e0] sm:$0xff] %v1043
    %1172 = vst [vmem:[#allocation5 + $0x3e8] sm:$0xff] %v1044
    %1173 = vst [vmem:[#allocation5 + $0x3f0] sm:$0xff] %v1045
    %1174 = vst [vmem:[#allocation5 + $0x3f8] sm:$0xff] %v1046
    // Predicated region
    $region10: #{tpu_custom_call.1} parent=1 // pred_check
      _
    $region11: #{tpu_custom_call.1} parent=1 // pred_check_branch
      %1176 = sbr.rel (0) target = $region13
    $region12: #{tpu_custom_call.1} parent=1 // pred_region
      %s1178 = ssub.s32 16384, 16384
      %1179 = vsyncadd [#allocation4], %s1178
      %s1180 = sshll.u32 [#allocation5], 4
      %s1181 = int_to_ptr.vmem [resolvable:$true] %s1180
      %1186 = dma.vmem_to_hbm [thread:$0]  %s1181, 16384, %s1, [#allocation4], 4096, 4096, 256
    $region13: #{tpu_custom_call.1} parent=1 // pred_fallthru
      _
    // Predicated region
    $region14: #{tpu_custom_call.1} parent=1 // pred_check
      _
    $region15: #{tpu_custom_call.1} parent=1 // pred_check_branch
      %1188 = sbr.rel (0) target = $region17
    $region16: #{tpu_custom_call.1} parent=1 // pred_region
      %1189 = dma.done [#allocation4], 16384
    $region17: #{tpu_custom_call.1} parent=1 // pred_fallthru
      _
    %1190 = vsyncpa [#allocation3], 1
    %1191 = vsyncpa [#allocation4], 1

</llo_original>
